<compile_context>
chip_gen: v5e
topology: v5e:2x2
jax: 0.10.0
libtpu: 0.0.40
codegen_flags: <defaults>
</compile_context>

<pallas_src>
import math

import jax
import jax.numpy as jnp
from jax.experimental import pallas as pl
from jax.experimental.pallas import tpu as pltpu

_FILTERS = 1
_FLAT = 7 * 7 * _FILTERS   # 49
_HIDDEN = 32

_NEG_SLOPE = 0.01          # F.leaky_relu default negative_slope


def _round_up(n, m):
    return ((n + m - 1) // m) * m


def _value_head_kernel(x_ref, w1_ref, b1_ref, w2_ref, b2_ref, o_ref):
    # fc1 on the MXU: [TB, 49] @ [49, 32], f32 accumulate.
    h = jnp.dot(x_ref[...], w1_ref[...], preferred_element_type=jnp.float32)
    h = h + b1_ref[...].astype(jnp.float32)
    # leaky_relu (negative_slope = 0.01) on the VPU.
    h = jnp.where(h > 0, h, _NEG_SLOPE * h)
    # fc2 (output width 1): VPU multiply + XLU lane reduction instead of
    # wasting a full MXU push/pop on an N=1 matmul.
    w2_row = w2_ref[...].astype(jnp.float32)                     # (1, 32)
    y = jnp.sum(h * w2_row, axis=-1)                             # (TB,)
    y = y.reshape(1, 1, -1) + b2_ref[...].astype(jnp.float32)    # (1, 1, TB)
    # tanh -> EUP slot.  Lane-dense store: o_ref block is (1, 1, TB).
    o_ref[...] = jnp.tanh(y).astype(o_ref.dtype)


def value_head_forward(x, w1, b1, w2, b2, *, block_b=4096):
    """x: [B, 49] -> [B, 1] float32.

    Weights are stored transposed vs. PyTorch: w1 [49, 32], b1 [1, 32],
    w2 [32, 1], b2 [1, 1].
    """
    B = x.shape[0]
    # Batch tile: multiple of 128 (lane-dense output, sublane-aligned x tile),
    # large (default 4096, ~800 KB of x per step) to amortize the ~0.35 us
    # per-grid-step overhead, but never much larger than the batch itself.
    tb = min(block_b, max(128, _round_up(B, 128)))
    num_tiles = pl.cdiv(B, tb)

    # Hoisted outside the kernel: fc2 weight as a (1, 32) lane row.
    w2_row = w2.reshape(1, _HIDDEN)

    const2d = lambda i: (0, 0)
    out = pl.pallas_call(
        _value_head_kernel,
        out_shape=jax.ShapeDtypeStruct((num_tiles, 1, tb), jnp.float32),
        grid=(num_tiles,),
        in_specs=[
            pl.BlockSpec((tb, _FLAT), lambda i: (i, 0)),   # x tile (pipelined)
            pl.BlockSpec((_FLAT, _HIDDEN), const2d),       # w1 (VMEM-resident)
            pl.BlockSpec((1, _HIDDEN), const2d),           # b1
            pl.BlockSpec((1, _HIDDEN), const2d),           # w2 row
            pl.BlockSpec((1, 1), const2d),                 # b2
        ],
        out_specs=pl.BlockSpec((1, 1, tb), lambda i: (i, 0, 0)),
        compiler_params=pltpu.CompilerParams(
            dimension_semantics=("parallel",),
        ),
    )(x, w1, b1, w2_row, b2)
    # (num_tiles, 1, tb) lane-major slab -> (B, 1); padded rows of the last
    # tile are discarded here.
    return out.reshape(-1)[:B].reshape(B, 1)


def init_params(key):
    """Deterministic init mimicking torch.nn.Linear default U[-1/sqrt(fan_in), 1/sqrt(fan_in)]."""
    k1, k2, k3, k4 = jax.random.split(key, 4)
    bound1 = 1.0 / math.sqrt(_FLAT)
    bound2 = 1.0 / math.sqrt(_HIDDEN)
    w1 = jax.random.uniform(k1, (_FLAT, _HIDDEN), jnp.float32, -bound1, bound1)
    b1 = jax.random.uniform(k2, (1, _HIDDEN), jnp.float32, -bound1, bound1)
    w2 = jax.random.uniform(k3, (_HIDDEN, 1), jnp.float32, -bound2, bound2)
    b2 = jax.random.uniform(k4, (1, 1), jnp.float32, -bound2, bound2)
    return w1, b1, w2, b2


def reference_forward(x, w1, b1, w2, b2):
    h = x @ w1 + b1
    h = jnp.where(h > 0, h, _NEG_SLOPE * h)
    # fc2 written as mul + lane-sum (mathematically identical to h @ w2 + b2)
    # so the comparison is f32-vs-f32 regardless of default matmul precision.
    y = jnp.sum(h * w2.reshape(1, -1), axis=-1, keepdims=True) + b2
    return jnp.tanh(y)


if __name__ == "__main__":
    key = jax.random.PRNGKey(0)
    k_params, k_x = jax.random.split(key)

    w1, b1, w2, b2 = init_params(k_params)

    # Small batch (single padded tile).
    batch = 8
    x = jax.random.normal(k_x, (batch, _FLAT), jnp.float32)
    out = jax.block_until_ready(value_head_forward(x, w1, b1, w2, b2))
    ref = reference_forward(x, w1, b1, w2, b2)
    assert out.shape == (batch, 1)
    assert jnp.allclose(out, ref, atol=1e-4, rtol=1e-4), "mismatch vs JAX reference"

    # Multi-tile batch not divisible by the tile size (exercises the padded
    # last-tile path and the lane-dense writeback/reshape).
    batch2 = 300
    x2 = jax.random.normal(jax.random.PRNGKey(1), (batch2, _FLAT), jnp.float32)
    out2 = jax.block_until_ready(value_head_forward(x2, w1, b1, w2, b2, block_b=256))
    ref2 = reference_forward(x2, w1, b1, w2, b2)
    assert out2.shape == (batch2, 1)
    assert jnp.allclose(out2, ref2, atol=1e-4, rtol=1e-4), "mismatch (padded tile path)"

    print("KERNEL_OK")
</pallas_src>

<mosaic_0001>
module attributes {stable_mosaic.version = 11 : i64} {
  func.func @_value_head_kernel(%arg0: i32, %arg1: memref<128x49xf32, #tpu.memory_space<vmem>>, %arg2: memref<49x32xf32, #tpu.memory_space<vmem>>, %arg3: memref<1x32xf32, #tpu.memory_space<vmem>>, %arg4: memref<1x32xf32, #tpu.memory_space<vmem>>, %arg5: memref<1x1xf32, #tpu.memory_space<vmem>>, %arg6: memref<1x1x128xf32, #tpu.memory_space<vmem>>) attributes {dimension_semantics = [#tpu.dimension_semantics<parallel>], iteration_bounds = array<i64: 1>, scalar_prefetch = 0 : i64, scratch_operands = 0 : i64, tpu.core_type = #tpu.core_type<tc>, window_params = [{transform_indices = @transform_0, window_bounds = array<i64: 128, 49>}, {pipeline_mode = #tpu.pipeline_mode<synchronous>, transform_indices = @transform_1, window_bounds = array<i64: 49, 32>}, {pipeline_mode = #tpu.pipeline_mode<synchronous>, transform_indices = @transform_2, window_bounds = array<i64: 1, 32>}, {pipeline_mode = #tpu.pipeline_mode<synchronous>, transform_indices = @transform_3, window_bounds = array<i64: 1, 32>}, {pipeline_mode = #tpu.pipeline_mode<synchronous>, transform_indices = @transform_4, window_bounds = array<i64: 1, 1>}, {transform_indices = @transform_5, window_bounds = array<i64: 1, 1, 128>}]} {
    %c0 = arith.constant 0 : index
    %c0_0 = arith.constant 0 : index
    %0 = vector.load %arg1[%c0, %c0_0] : memref<128x49xf32, #tpu.memory_space<vmem>>, vector<128x49xf32>
    %c0_1 = arith.constant 0 : index
    %c0_2 = arith.constant 0 : index
    %1 = vector.load %arg2[%c0_1, %c0_2] : memref<49x32xf32, #tpu.memory_space<vmem>>, vector<49x32xf32>
    %cst = arith.constant dense<0.000000e+00> : vector<128x32xf32>
    %2 = tpu.matmul %0, %1, %cst {dimension_numbers = #tpu.dot_dimension_numbers<[1], [0], [0], [1], [0, 0, 1, 1], [], []>} : vector<128x49xf32>, vector<49x32xf32>, vector<128x32xf32> -> vector<128x32xf32>
    %c0_3 = arith.constant 0 : index
    %c0_4 = arith.constant 0 : index
    %3 = vector.load %arg3[%c0_3, %c0_4] : memref<1x32xf32, #tpu.memory_space<vmem>>, vector<1x32xf32>
    %4 = vector.broadcast %3 : vector<1x32xf32> to vector<128x32xf32>
    %5 = arith.addf %2, %4 : vector<128x32xf32>
    %cst_5 = arith.constant 0.000000e+00 : f32
    %6 = vector.broadcast %cst_5 : f32 to vector<128x32xf32>
    %7 = arith.cmpf ogt, %5, %6 : vector<128x32xf32>
    %cst_6 = arith.constant 0.00999999977 : f32
    %8 = vector.broadcast %cst_6 : f32 to vector<128x32xf32>
    %9 = arith.mulf %8, %5 : vector<128x32xf32>
    %10 = arith.select %7, %5, %9 : vector<128x32xi1>, vector<128x32xf32>
    %c0_7 = arith.constant 0 : index
    %c0_8 = arith.constant 0 : index
    %11 = vector.load %arg4[%c0_7, %c0_8] : memref<1x32xf32, #tpu.memory_space<vmem>>, vector<1x32xf32>
    %12 = vector.broadcast %11 : vector<1x32xf32> to vector<128x32xf32>
    %13 = arith.mulf %10, %12 : vector<128x32xf32>
    %cst_9 = arith.constant dense<0.000000e+00> : vector<128xf32>
    %14 = vector.multi_reduction <add>, %13, %cst_9 [1] : vector<128x32xf32> to vector<128xf32>
    %15 = vector.shape_cast %14 : vector<128xf32> to vector<1x1x128xf32>
    %c0_10 = arith.constant 0 : index
    %c0_11 = arith.constant 0 : index
    %16 = vector.load %arg5[%c0_10, %c0_11] : memref<1x1xf32, #tpu.memory_space<vmem>>, vector<1x1xf32>
    %17 = vector.shape_cast %16 : vector<1x1xf32> to vector<1x1x1xf32>
    %18 = vector.broadcast %17 : vector<1x1x1xf32> to vector<1x1x128xf32>
    %19 = arith.addf %15, %18 : vector<1x1x128xf32>
    %20 = math.tanh %19 : vector<1x1x128xf32>
    %c0_12 = arith.constant 0 : index
    %c0_13 = arith.constant 0 : index
    %c0_14 = arith.constant 0 : index
    %21 = vector.load %arg6[%c0_12, %c0_13, %c0_14] : memref<1x1x128xf32, #tpu.memory_space<vmem>>, vector<1x1x128xf32>
    tpu.vector_store %arg6[%c0_12, %c0_13, %c0_14], %20 {strides = array<i32>} : memref<1x1x128xf32, #tpu.memory_space<vmem>>, vector<1x1x128xf32>,
    return
  }
  func.func @transform_0(%arg0: i32) -> (i32, i32) {
    %c0_i32 = arith.constant 0 : i32
    %c0_i32_0 = arith.constant 0 : i32
    return %arg0, %c0_i32 : i32, i32
  }
  func.func @transform_1(%arg0: i32) -> (i32, i32) {
    %c0_i32 = arith.constant 0 : i32
    %c0_i32_0 = arith.constant 0 : i32
    %c0_i32_1 = arith.constant 0 : i32
    return %c0_i32, %c0_i32_0 : i32, i32
  }
  func.func @transform_2(%arg0: i32) -> (i32, i32) {
    %c0_i32 = arith.constant 0 : i32
    %c0_i32_0 = arith.constant 0 : i32
    %c0_i32_1 = arith.constant 0 : i32
    return %c0_i32, %c0_i32_0 : i32, i32
  }
  func.func @transform_3(%arg0: i32) -> (i32, i32) {
    %c0_i32 = arith.constant 0 : i32
    %c0_i32_0 = arith.constant 0 : i32
    %c0_i32_1 = arith.constant 0 : i32
    return %c0_i32, %c0_i32_0 : i32, i32
  }
  func.func @transform_4(%arg0: i32) -> (i32, i32) {
    %c0_i32 = arith.constant 0 : i32
    %c0_i32_0 = arith.constant 0 : i32
    %c0_i32_1 = arith.constant 0 : i32
    return %c0_i32, %c0_i32_0 : i32, i32
  }
  func.func @transform_5(%arg0: i32) -> (i32, i32, i32) {
    %c0_i32 = arith.constant 0 : i32
    %c0_i32_0 = arith.constant 0 : i32
    %c0_i32_1 = arith.constant 0 : i32
    return %arg0, %c0_i32, %c0_i32_0 : i32, i32, i32
  }
}

</mosaic_0001>

<llo_original>
// kernel: tpu_custom_call.1
$region0: #{tpu_custom_call.1}
  #allocation0 [shape = 'u32[]', space=smem, size = 0x4, offset = 0x4, fixed_abs, tag = 'smem constant byte address 0x4 - core index']
  #allocation1 [shape = 'u32[72,128]{1,0:T(1,128)}', space=vmem, size = 0x9000, scoped, tag = 'internal scratch']
  #allocation2 [shape = 'f32[1,1]{1,0:T(1,128)S(1)}', space=vmem, size = 0x200, scoped, tag = 'scoped memory for tpu_custom_call.1']
  %s0 = inlined_call_operand.vmem [shape: f32[8,49], index: 0, kind: input, shape index: {}]
  %s1 = inlined_call_operand.vmem [shape: f32[49,32], index: 1, kind: input, shape index: {}]
  %s2 = inlined_call_operand.vmem [shape: f32[1,32], index: 2, kind: input, shape index: {}]
  %s3 = inlined_call_operand.vmem [shape: f32[1,32], index: 3, kind: input, shape index: {}]
  %s4 = inlined_call_operand.<no memory space> [shape: f32[1,1], index: 4, kind: input, shape index: {}]
  %s5 = inlined_call_operand.hbm [shape: f32[1,1,128], index: 5, kind: output, shape index: {}]
  %s6 = sld [smem:[#allocation0]]
  $region30: #{tpu_custom_call.1} parent=0
    _
  %s8 = ssub.s32 1, %s6
  %s9 = scalar_select 0, %s8, %s6
  %v10 = vstv %s4
  %11 = vst [vmem:[#allocation2] sm:$0x1] %v10
  $region1: #{tpu_custom_call.1} parent=0
    #allocation3 [shape = 'u8[512]{0}', space=vmem, size = 0x400, scoped, tag = 'output window, operand 0, single buffered']
    #allocation4 [shape = 's32[1]{0}', space=sflag, size = 0x4, scoped, tag = 'scoped memory for tpu_custom_call.1']
    %12 = vsyncpa [#allocation4], 0
    // Predicated region
    $region2: #{tpu_custom_call.1} parent=1 // pred_check
      _
    $region3: #{tpu_custom_call.1} parent=1 // pred_check_branch
      %14 = sbr.rel (0) target = $region5
    $region4: #{tpu_custom_call.1} parent=1 // pred_region
      _
    $region5: #{tpu_custom_call.1} parent=1 // pred_fallthru
      _
    // Predicated region
    $region6: #{tpu_custom_call.1} parent=1 // pred_check
      _
    $region7: #{tpu_custom_call.1} parent=1 // pred_check_branch
      %16 = sbr.rel (0) target = $region9
    $region8: #{tpu_custom_call.1} parent=1 // pred_region
      _
    $region9: #{tpu_custom_call.1} parent=1 // pred_fallthru
      _
    // Predicated region
    $region10: #{tpu_custom_call.1} parent=1 // pred_check
      _
    $region11: #{tpu_custom_call.1} parent=1 // pred_check_branch
      %18 = sbr.rel (0) target = $region13
    $region12: #{tpu_custom_call.1} parent=1 // pred_region
      _
    $region13: #{tpu_custom_call.1} parent=1 // pred_fallthru
      _
    // Predicated region
    $region14: #{tpu_custom_call.1} parent=1 // pred_check
      _
    $region15: #{tpu_custom_call.1} parent=1 // pred_check_branch
      %20 = sbr.rel (0) target = $region17
    $region16: #{tpu_custom_call.1} parent=1 // pred_region
      _
    $region17: #{tpu_custom_call.1} parent=1 // pred_fallthru
      _
    // Predicated region
    $region18: #{tpu_custom_call.1} parent=1 // pred_check
      _
    $region19: #{tpu_custom_call.1} parent=1 // pred_check_branch
      %22 = sbr.rel (0) target = $region21
    $region20: #{tpu_custom_call.1} parent=1 // pred_region
      _
    $region21: #{tpu_custom_call.1} parent=1 // pred_fallthru
      _
    %v23 = vld [vmem:[%s0] sm:$0xff]
    %v24 = vld [vmem:[%s0 + $0x8] sm:$0xff]
    %v25 = vld [vmem:[%s0 + $0x10] sm:$0xff]
    %v26 = vld [vmem:[%s0 + $0x18] sm:$0xff]
    %v27 = vld [vmem:[%s0 + $0x20] sm:$0xff]
    %v28 = vld [vmem:[%s0 + $0x28] sm:$0xff]
    %v29 = vld [vmem:[%s0 + $0x30] sm:$0xff]
    %v30 = vld [vmem:[%s0 + $0x38] sm:$0xff]
    %v31 = vld [vmem:[%s0 + $0x40] sm:$0xff]
    %v32 = vld [vmem:[%s0 + $0x48] sm:$0xff]
    %v33 = vld [vmem:[%s0 + $0x50] sm:$0xff]
    %v34 = vld [vmem:[%s0 + $0x58] sm:$0xff]
    %v35 = vld [vmem:[%s0 + $0x60] sm:$0xff]
    %v36 = vld [vmem:[%s0 + $0x68] sm:$0xff]
    %v37 = vld [vmem:[%s0 + $0x70] sm:$0xff]
    %v38 = vld [vmem:[%s0 + $0x78] sm:$0xff]
    %v39 = vld [vmem:[%s1] sm:$0xff]
    %v40 = vld [vmem:[%s1 + $0x8] sm:$0xff]
    %v41 = vld [vmem:[%s1 + $0x10] sm:$0xff]
    %v42 = vld [vmem:[%s1 + $0x18] sm:$0xff]
    %v43 = vld [vmem:[%s1 + $0x20] sm:$0xff]
    %v44 = vld [vmem:[%s1 + $0x28] sm:$0xff]
    %v45 = vld [vmem:[%s1 + $0x30] sm:$0x1]
    %v46 = vld [vmem:[%s2] sm:$0x1]
    %v48 = vperm.slane %v46, 0
    %vm50 = vcmask 400384
    %v52 = vsel %vm50, %v23, 0
    %v55 = vsel %vm50, %v24, 0
    %v58 = vsel %vm50, %v25, 0
    %v61 = vsel %vm50, %v26, 0
    %v64 = vsel %vm50, %v27, 0
    %v67 = vsel %vm50, %v28, 0
    %v70 = vsel %vm50, %v29, 0
    %v73 = vsel %vm50, %v30, 0
    %v76 = vsel %vm50, %v31, 0
    %v79 = vsel %vm50, %v32, 0
    %v82 = vsel %vm50, %v33, 0
    %v85 = vsel %vm50, %v34, 0
    %v88 = vsel %vm50, %v35, 0
    %v91 = vsel %vm50, %v36, 0
    %v94 = vsel %vm50, %v37, 0
    %v97 = vsel %vm50, %v38, 0
    %vm99 = vcmask 1040384
    %v101 = vsel %vm99, %v45, 0
    %103 = vmatpush.msra.mxu0 0.0
    %104 = vmatpush.msra.mxu0 0.0
    %105 = vmatpush.msra.mxu0 0.0
    %106 = vmatpush.msra.mxu0 0.0
    %107 = vmatpush.msra.mxu0 0.0
    %108 = vmatpush.msra.mxu0 0.0
    %109 = vmatpush.msra.mxu0 0.0
    %110 = vmatpush.msra.mxu0 0.0
    %111 = vmatpush.msra.mxu0 0.0
    %112 = vmatpush.msra.mxu0 %v101
    %113 = vmatpush.msra.mxu0 %v44
    %114 = vmatpush.msra.mxu0 %v43
    %115 = vmatpush.msra.mxu0 %v42
    %116 = vmatpush.msra.mxu0 %v41
    %117 = vmatpush.msra.mxu0 %v40
    %118 = vmatpush.msra.mxu0 %v39
    %119 = vmatmul.f32.gmra.mxu0 %v52
    %v120 = vpop.f32.mrf.mxu0
    %v121 = vadd.f32 %v48, %v120
    %122 = vmatmul.f32.gmra.mxu0 %v55
    %v123 = vpop.f32.mrf.mxu0
    %v124 = vadd.f32 %v48, %v123
    %125 = vmatmul.f32.gmra.mxu0 %v58
    %v126 = vpop.f32.mrf.mxu0
    %v127 = vadd.f32 %v48, %v126
    %128 = vmatmul.f32.gmra.mxu0 %v61
    %v129 = vpop.f32.mrf.mxu0
    %v130 = vadd.f32 %v48, %v129
    %131 = vmatmul.f32.gmra.mxu0 %v64
    %v132 = vpop.f32.mrf.mxu0
    %v133 = vadd.f32 %v48, %v132
    %134 = vmatmul.f32.gmra.mxu0 %v67
    %v135 = vpop.f32.mrf.mxu0
    %v136 = vadd.f32 %v48, %v135
    %137 = vmatmul.f32.gmra.mxu0 %v70
    %v138 = vpop.f32.mrf.mxu0
    %v139 = vadd.f32 %v48, %v138
    %140 = vmatmul.f32.gmra.mxu0 %v73
    %v141 = vpop.f32.mrf.mxu0
    %v142 = vadd.f32 %v48, %v141
    %143 = vmatmul.f32.gmra.mxu0 %v76
    %v144 = vpop.f32.mrf.mxu0
    %v145 = vadd.f32 %v48, %v144
    %146 = vmatmul.f32.gmra.mxu0 %v79
    %v147 = vpop.f32.mrf.mxu0
    %v148 = vadd.f32 %v48, %v147
    %149 = vmatmul.f32.gmra.mxu0 %v82
    %v150 = vpop.f32.mrf.mxu0
    %v151 = vadd.f32 %v48, %v150
    %152 = vmatmul.f32.gmra.mxu0 %v85
    %v153 = vpop.f32.mrf.mxu0
    %v154 = vadd.f32 %v48, %v153
    %155 = vmatmul.f32.gmra.mxu0 %v88
    %v156 = vpop.f32.mrf.mxu0
    %v157 = vadd.f32 %v48, %v156
    %158 = vmatmul.f32.gmra.mxu0 %v91
    %v159 = vpop.f32.mrf.mxu0
    %v160 = vadd.f32 %v48, %v159
    %161 = vmatmul.f32.gmra.mxu0 %v94
    %v162 = vpop.f32.mrf.mxu0
    %v163 = vadd.f32 %v48, %v162
    %164 = vmatmul.f32.gmra.mxu0 %v97
    %v165 = vpop.f32.mrf.mxu0
    %v166 = vadd.f32 %v48, %v165
    %167 = vdwg.mxu0
    %vm168 = vcmp.gt.f32.partialorder %v121, 0.0
    %vm169 = vcmp.gt.f32.partialorder %v124, 0.0
    %vm170 = vcmp.gt.f32.partialorder %v127, 0.0
    %vm171 = vcmp.gt.f32.partialorder %v130, 0.0
    %vm172 = vcmp.gt.f32.partialorder %v133, 0.0
    %vm173 = vcmp.gt.f32.partialorder %v136, 0.0
    %vm174 = vcmp.gt.f32.partialorder %v139, 0.0
    %vm175 = vcmp.gt.f32.partialorder %v142, 0.0
    %vm176 = vcmp.gt.f32.partialorder %v145, 0.0
    %vm177 = vcmp.gt.f32.partialorder %v148, 0.0
    %vm178 = vcmp.gt.f32.partialorder %v151, 0.0
    %vm179 = vcmp.gt.f32.partialorder %v154, 0.0
    %vm180 = vcmp.gt.f32.partialorder %v157, 0.0
    %vm181 = vcmp.gt.f32.partialorder %v160, 0.0
    %vm182 = vcmp.gt.f32.partialorder %v163, 0.0
    %vm183 = vcmp.gt.f32.partialorder %v166, 0.0
    %v184 = vmul.f32 %v121, 0.01
    %v185 = vmul.f32 %v124, 0.01
    %v186 = vmul.f32 %v127, 0.01
    %v187 = vmul.f32 %v130, 0.01
    %v188 = vmul.f32 %v133, 0.01
    %v189 = vmul.f32 %v136, 0.01
    %v190 = vmul.f32 %v139, 0.01
    %v191 = vmul.f32 %v142, 0.01
    %v192 = vmul.f32 %v145, 0.01
    %v193 = vmul.f32 %v148, 0.01
    %v194 = vmul.f32 %v151, 0.01
    %v195 = vmul.f32 %v154, 0.01
    %v196 = vmul.f32 %v157, 0.01
    %v197 = vmul.f32 %v160, 0.01
    %v198 = vmul.f32 %v163, 0.01
    %v199 = vmul.f32 %v166, 0.01
    %v200 = vsel %vm168, %v121, %v184
    %v201 = vsel %vm169, %v124, %v185
    %v202 = vsel %vm170, %v127, %v186
    %v203 = vsel %vm171, %v130, %v187
    %v204 = vsel %vm172, %v133, %v188
    %v205 = vsel %vm173, %v136, %v189
    %v206 = vsel %vm174, %v139, %v190
    %v207 = vsel %vm175, %v142, %v191
    %v208 = vsel %vm176, %v145, %v192
    %v209 = vsel %vm177, %v148, %v193
    %v210 = vsel %vm178, %v151, %v194
    %v211 = vsel %vm179, %v154, %v195
    %v212 = vsel %vm180, %v157, %v196
    %v213 = vsel %vm181, %v160, %v197
    %v214 = vsel %vm182, %v163, %v198
    %v215 = vsel %vm183, %v166, %v199
    %v216 = vld [vmem:[%s3] sm:$0x1]
    %v218 = vperm.slane %v216, 0
    %v220 = vmul.f32 %v200, %v218
    %v221 = vmul.f32 %v201, %v218
    %v222 = vmul.f32 %v202, %v218
    %v223 = vmul.f32 %v203, %v218
    %v224 = vmul.f32 %v204, %v218
    %v225 = vmul.f32 %v205, %v218
    %v226 = vmul.f32 %v206, %v218
    %v227 = vmul.f32 %v207, %v218
    %v228 = vmul.f32 %v208, %v218
    %v229 = vmul.f32 %v209, %v218
    %v230 = vmul.f32 %v210, %v218
    %v231 = vmul.f32 %v211, %v218
    %v232 = vmul.f32 %v212, %v218
    %v233 = vmul.f32 %v213, %v218
    %v234 = vmul.f32 %v214, %v218
    %v235 = vmul.f32 %v215, %v218
    %vm236 = vcmask 261120
    %v237 = vsel %vm236, %v220, 0.0
    %238 = vadd.xlane.f32.xlu0 %v237
    %v239 = vpop.xlane.xlu0 %238
    %v240 = vsel %vm236, %v221, 0.0
    %241 = vadd.xlane.f32.xlu0 %v240
    %v242 = vpop.xlane.xlu0 %241
    %v243 = vsel %vm236, %v222, 0.0
    %244 = vadd.xlane.f32.xlu0 %v243
    %v245 = vpop.xlane.xlu0 %244
    %v246 = vsel %vm236, %v223, 0.0
    %247 = vadd.xlane.f32.xlu0 %v246
    %v248 = vpop.xlane.xlu0 %247
    %v249 = vsel %vm236, %v224, 0.0
    %250 = vadd.xlane.f32.xlu0 %v249
    %v251 = vpop.xlane.xlu0 %250
    %v252 = vsel %vm236, %v225, 0.0
    %253 = vadd.xlane.f32.xlu0 %v252
    %v254 = vpop.xlane.xlu0 %253
    %v255 = vsel %vm236, %v226, 0.0
    %256 = vadd.xlane.f32.xlu0 %v255
    %v257 = vpop.xlane.xlu0 %256
    %v258 = vsel %vm236, %v227, 0.0
    %259 = vadd.xlane.f32.xlu0 %v258
    %v260 = vpop.xlane.xlu0 %259
    %v261 = vsel %vm236, %v228, 0.0
    %262 = vadd.xlane.f32.xlu0 %v261
    %v263 = vpop.xlane.xlu0 %262
    %v264 = vsel %vm236, %v229, 0.0
    %265 = vadd.xlane.f32.xlu0 %v264
    %v266 = vpop.xlane.xlu0 %265
    %v267 = vsel %vm236, %v230, 0.0
    %268 = vadd.xlane.f32.xlu0 %v267
    %v269 = vpop.xlane.xlu0 %268
    %v270 = vsel %vm236, %v231, 0.0
    %271 = vadd.xlane.f32.xlu0 %v270
    %v272 = vpop.xlane.xlu0 %271
    %v273 = vsel %vm236, %v232, 0.0
    %274 = vadd.xlane.f32.xlu0 %v273
    %v275 = vpop.xlane.xlu0 %274
    %v276 = vsel %vm236, %v233, 0.0
    %277 = vadd.xlane.f32.xlu0 %v276
    %v278 = vpop.xlane.xlu0 %277
    %v279 = vsel %vm236, %v234, 0.0
    %280 = vadd.xlane.f32.xlu0 %v279
    %v281 = vpop.xlane.xlu0 %280
    %v282 = vsel %vm236, %v235, 0.0
    %283 = vadd.xlane.f32.xlu0 %v282
    %v284 = vpop.xlane.xlu0 %283
    %v285 = vld [vmem:[#allocation2] sm:$0x1]
    %287 = vset.pattern.permute.xlu0 0
    %288 = vperm.xlu0 %287, %v285
    %v289 = vpop.permute.xlu0 %288
    %v291 = vperm.slane %v289, 0
    %v292 = vadd.f32 %v239, %v291
    %v293 = vadd.f32 %v242, %v291
    %v294 = vadd.f32 %v245, %v291
    %v295 = vadd.f32 %v248, %v291
    %v296 = vadd.f32 %v251, %v291
    %v297 = vadd.f32 %v254, %v291
    %v298 = vadd.f32 %v257, %v291
    %v299 = vadd.f32 %v260, %v291
    %v300 = vadd.f32 %v263, %v291
    %v301 = vadd.f32 %v266, %v291
    %v302 = vadd.f32 %v269, %v291
    %v303 = vadd.f32 %v272, %v291
    %v304 = vadd.f32 %v275, %v291
    %v305 = vadd.f32 %v278, %v291
    %v306 = vadd.f32 %v281, %v291
    %v307 = vadd.f32 %v284, %v291
    %v308 = vtanh.pop %v292
    %v309 = vtanh.pop %v293
    %v310 = vtanh.pop %v294
    %v311 = vtanh.pop %v295
    %v312 = vtanh.pop %v296
    %v313 = vtanh.pop %v297
    %v314 = vtanh.pop %v298
    %v315 = vtanh.pop %v299
    %v316 = vtanh.pop %v300
    %v317 = vtanh.pop %v301
    %v318 = vtanh.pop %v302
    %v319 = vtanh.pop %v303
    %v320 = vtanh.pop %v304
    %v321 = vtanh.pop %v305
    %v322 = vtanh.pop %v306
    %v323 = vtanh.pop %v307
    %v340 = vlaneseq
    %v341 = vand.u32 %v340, 127
    %v342 = vperm.slane %v308, %v341
    %v343 = vadd.s32 %v341, 4294967288
    %v344 = vperm.slane %v309, %v343
    %vm345 = vcmask 130112
    %v346 = vsel %vm345, %v344, %v342
    %v347 = vadd.s32 %v341, 4294967280
    %v348 = vperm.slane %v310, %v347
    %vm349 = vcmask 195712
    %v350 = vsel %vm349, %v348, %v346
    %v351 = vadd.s32 %v341, 4294967272
    %v352 = vperm.slane %v311, %v351
    %vm353 = vcmask 261312
    %v354 = vsel %vm353, %v352, %v350
    %v355 = vadd.s32 %v341, 4294967264
    %v356 = vperm.slane %v312, %v355
    %vm357 = vcmask 326912
    %v358 = vsel %vm357, %v356, %v354
    %v359 = vadd.s32 %v341, 4294967256
    %v360 = vperm.slane %v313, %v359
    %vm361 = vcmask 392512
    %v362 = vsel %vm361, %v360, %v358
    %v363 = vadd.s32 %v341, 4294967248
    %v364 = vperm.slane %v314, %v363
    %vm365 = vcmask 458112
    %v366 = vsel %vm365, %v364, %v362
    %v367 = vadd.s32 %v341, 4294967240
    %v368 = vperm.slane %v315, %v367
    %vm369 = vcmask 523712
    %v370 = vsel %vm369, %v368, %v366
    %v371 = vadd.s32 %v341, 4294967232
    %v372 = vperm.slane %v316, %v371
    %vm373 = vcmask 589312
    %v374 = vsel %vm373, %v372, %v370
    %v375 = vadd.s32 %v341, 4294967224
    %v376 = vperm.slane %v317, %v375
    %vm377 = vcmask 654912
    %v378 = vsel %vm377, %v376, %v374
    %v379 = vadd.s32 %v341, 4294967216
    %v380 = vperm.slane %v318, %v379
    %vm381 = vcmask 720512
    %v382 = vsel %vm381, %v380, %v378
    %v383 = vadd.s32 %v341, 4294967208
    %v384 = vperm.slane %v319, %v383
    %vm385 = vcmask 786112
    %v386 = vsel %vm385, %v384, %v382
    %v387 = vadd.s32 %v341, 4294967200
    %v388 = vperm.slane %v320, %v387
    %vm389 = vcmask 851712
    %v390 = vsel %vm389, %v388, %v386
    %v391 = vadd.s32 %v341, 4294967192
    %v392 = vperm.slane %v321, %v391
    %vm393 = vcmask 917312
    %v394 = vsel %vm393, %v392, %v390
    %v395 = vadd.s32 %v341, 4294967184
    %v396 = vperm.slane %v322, %v395
    %vm397 = vcmask 982912
    %v398 = vsel %vm397, %v396, %v394
    %v399 = vadd.s32 %v341, 4294967176
    %v400 = vperm.slane %v323, %v399
    %vm401 = vcmask 1048512
    %v402 = vsel %vm401, %v400, %v398
    %404 = vst [vmem:[#allocation3] sm:$0x1] %v402
    // Predicated region
    $region22: #{tpu_custom_call.1} parent=1 // pred_check
      _
    $region23: #{tpu_custom_call.1} parent=1 // pred_check_branch
      %406 = sbr.rel (0) target = $region25
    $region24: #{tpu_custom_call.1} parent=1 // pred_region
      %408 = vsyncadd [#allocation4], 0
      %s410 = sshll.u32 [#allocation3], 4
      %s411 = int_to_ptr.vmem [resolvable:$true] %s410
      %s412 = sshll.u32 %s5, 4
      %s413 = int_to_ptr.hbm [resolvable:$true] %s412
      %415 = dma.vmem_to_hbm [thread:$0]  %s411, 16, %s413, [#allocation4]
    $region25: #{tpu_custom_call.1} parent=1 // pred_fallthru
      _
    // Predicated region
    $region26: #{tpu_custom_call.1} parent=1 // pred_check
      _
    $region27: #{tpu_custom_call.1} parent=1 // pred_check_branch
      %417 = sbr.rel (0) target = $region29
    $region28: #{tpu_custom_call.1} parent=1 // pred_region
      %419 = dma.done [#allocation4], 16
    $region29: #{tpu_custom_call.1} parent=1 // pred_fallthru
      _
    %420 = vsyncpa [#allocation4], 1

</llo_original>
